<compile_context>
chip_gen: v7x
topology: tpu7x:2x2x1
jax: 0.10.0
libtpu: 0.0.40
codegen_flags: <defaults>
</compile_context>

<pallas_src>
from functools import partial

import numpy as np
import jax
import jax.numpy as jnp
from jax.experimental import pallas as pl
from jax.experimental.pallas import tpu as pltpu


def _pick_row_tile(rows, target, sub=8, min_steps=2):
    """Largest row tile <= target that divides `rows` and is a sublane multiple,
    preferring >= min_steps grid steps (v7x has 2 TensorCores).  Falls back to a single
    full-extent block if `rows` is not a sublane multiple (block == full dim is legal)."""
    cands = [t for t in range(sub, min(target, rows) + 1, sub) if rows % t == 0]
    if not cands:
        # TODO(synk): for huge, non-multiple-of-8 row counts add a masked last tile
        # instead of one whole-extent block.
        return rows
    pref = [t for t in cands if rows // t >= min_steps]
    return max(pref) if pref else max(cands)


def conv_stats_kernel(x_ref, w_ref, y_ref, psum_ref, psumsq_ref):
    """Pass 1 (bn=True): one MXU GEMM per row tile + partial BN statistics.

    x_ref: (TR, CD)   bf16 im2col rows (CD = K*Wp*Cin, full contraction in one matmul)
    w_ref: (CD, WC)   bf16 banded weights (WC = W_out*Cout, lane-dense)
    y_ref: (TR, WC)   f32 pre-BN activation tile (unmasked full-lane stores)
    psum_ref / psumsq_ref: (1, 1, WC) per-tile partial sum / sum-of-squares
    """
    acc = jnp.dot(x_ref[...], w_ref[...], preferred_element_type=jnp.float32)
    y_ref[...] = acc.astype(y_ref.dtype)
    wc = acc.shape[-1]
    psum_ref[...] = jnp.sum(acc, axis=0, keepdims=True).reshape(1, 1, wc)
    # TODO(synk): E[x^2]-E[x]^2 in f32 is fine at these magnitudes; switch to a Welford /
    # two-pass reduction if accumulators ever move below f32.
    psumsq_ref[...] = jnp.sum(acc * acc, axis=0, keepdims=True).reshape(1, 1, wc)


def conv_bias_act_kernel(x_ref, w_ref, b_ref, y_ref, *, with_relu):
    """Pass 1 (bn=False): GEMM + bias (+ ReLU) fused; no statistics, no second pass."""
    acc = jnp.dot(x_ref[...], w_ref[...], preferred_element_type=jnp.float32)
    acc = acc + b_ref[...]
    if with_relu:
        acc = jnp.maximum(acc, 0.0)
    y_ref[...] = acc.astype(y_ref.dtype)


def bn_act_kernel(y_ref, scale_ref, shift_ref, o_ref, *, with_relu):
    """Pass 2: per-channel affine normalize (+ReLU); purely element-wise, lane-dense."""
    out = y_ref[...].astype(jnp.float32) * scale_ref[...] + shift_ref[...]
    if with_relu:
        out = jnp.maximum(out, 0.0)
    o_ref[...] = out.astype(o_ref.dtype)


@partial(jax.jit, static_argnames=("stride", "same_padding", "bn", "relu", "eps",
                                   "matmul_dtype"))
def conv2d_forward(x_nchw, weight, bias, gamma, beta, *, stride=1, same_padding=True,
                   bn=True, relu=True, eps=1e-5, matmul_dtype=jnp.bfloat16):
    """PyTorch-equivalent forward: Conv2d -> BatchNorm2d(train) -> ReLU, NCHW in/out."""
    N, Cin, H, W = x_nchw.shape
    Cout, Cin_w, K, K2 = weight.shape
    assert Cin == Cin_w and K == K2
    pad = (K - 1) // 2 if same_padding else 0
    H_out = (H + 2 * pad - K) // stride + 1
    W_out = (W + 2 * pad - K) // stride + 1
    Hp, Wp = H + 2 * pad, W + 2 * pad
    WC = W_out * Cout                       # lane dim of y (128 for the demo config)
    CD = K * Wp * Cin                       # contraction depth (216 for the demo config)
    rows = N * H_out                        # flattened GEMM M dim
    out_dtype = x_nchw.dtype
    mm_bytes = jnp.dtype(matmul_dtype).itemsize

    # ---- wrapper glue: layout, padding, H-direction im2col, banded weights -------------
    # TODO(synk): for very large H*W*Cin the wrapper-side im2col duplicates x by K in HBM;
    # a halo'd row-window DMA variant (memory_space=pl.ANY + make_async_copy) avoids that.
    x = jnp.transpose(x_nchw, (0, 2, 3, 1))                       # NCHW -> NHWC
    x = jnp.pad(x, ((0, 0), (pad, pad), (pad, pad), (0, 0)))      # (N, Hp, Wp, Cin)
    row_idx = (jnp.arange(H_out) * stride)[:, None] + jnp.arange(K)[None, :]   # (H_out, K)
    xg = x[:, row_idx]                                            # (N, H_out, K, Wp, Cin)
    X = xg.reshape(rows, CD).astype(matmul_dtype)                 # bf16 MXU input

    # Banded weights folding all (kh, kw, ci) taps into one contraction of depth CD:
    #   B[kh*Wp*Cin + v*Cin + ci, u*Cout + co] = w[co, ci, kh, kw]  where v = u*stride+kw.
    w_t = jnp.transpose(weight, (2, 3, 1, 0))                     # OIHW -> (K, K, Cin, Cout)
    sel = np.zeros((K, Wp, W_out), np.float32)                    # trace-time constant
    for kw in range(K):
        for u in range(W_out):
            sel[kw, u * stride + kw, u] = 1.0
    B = jnp.einsum("avu,haco->hvcuo", jnp.asarray(sel, w_t.dtype), w_t)
    B = B.reshape(CD, WC).astype(matmul_dtype)

    TR1 = _pick_row_tile(rows, target=512)
    G1 = rows // TR1
    flops1 = 2 * rows * CD * WC

    if bn:
        bytes1 = mm_bytes * (rows * CD + CD * WC) + 4 * (rows * WC + 2 * G1 * WC)
        y, psum, psumsq = pl.pallas_call(
            conv_stats_kernel,
            grid=(G1,),
            in_specs=[
                pl.BlockSpec((TR1, CD), lambda r: (r, 0)),        # im2col rows (bf16)
                pl.BlockSpec((CD, WC), lambda r: (0, 0)),         # banded weights (bf16)
            ],
            out_specs=(
                pl.BlockSpec((TR1, WC), lambda r: (r, 0)),        # lane-dense y tile
                pl.BlockSpec((1, 1, WC), lambda r: (r, 0, 0)),    # partial sums
                pl.BlockSpec((1, 1, WC), lambda r: (r, 0, 0)),    # partial sum-squares
            ),
            out_shape=(
                jax.ShapeDtypeStruct((rows, WC), out_dtype),
                jax.ShapeDtypeStruct((G1, 1, WC), jnp.float32),
                jax.ShapeDtypeStruct((G1, 1, WC), jnp.float32),
            ),
            compiler_params=pltpu.CompilerParams(dimension_semantics=("parallel",)),
            cost_estimate=pl.CostEstimate(flops=flops1, transcendentals=0,
                                          bytes_accessed=bytes1),
        )(X, B)

        # Tiny wrapper reduction: per-tile partials -> per-channel batch statistics.
        cnt = jnp.float32(rows * W_out)                           # N * H_out * W_out
        ch_sum = psum.reshape(G1, W_out, Cout).sum(axis=(0, 1))
        ch_sumsq = psumsq.reshape(G1, W_out, Cout).sum(axis=(0, 1))
        mean = ch_sum / cnt
        var = jnp.maximum(ch_sumsq / cnt - mean * mean, 0.0)      # biased (training) var
        scale = gamma.astype(jnp.float32) * jax.lax.rsqrt(var + eps)
        # Conv bias cancels exactly under mean subtraction, so it was dropped from pass 1
        # and drops out of `shift` as well.
        shift = beta.astype(jnp.float32) - mean * scale
        # TODO(synk): running_mean/running_var momentum update (training-state side effect
        # of nn.BatchNorm2d) is not modeled; it does not affect the forward output.

        scale_row = jnp.tile(scale, W_out).reshape(1, WC)
        shift_row = jnp.tile(shift, W_out).reshape(1, WC)

        TR2 = _pick_row_tile(rows, target=512)                    # big tiles: pure HBM BW
        G2 = rows // TR2
        flops2 = 3 * rows * WC
        bytes2 = 4 * (2 * rows * WC + 2 * WC)
        y_final = pl.pallas_call(
            partial(bn_act_kernel, with_relu=relu),
            grid=(G2,),
            in_specs=[
                pl.BlockSpec((TR2, WC), lambda r: (r, 0)),
                pl.BlockSpec((1, WC), lambda r: (0, 0)),
                pl.BlockSpec((1, WC), lambda r: (0, 0)),
            ],
            out_specs=pl.BlockSpec((TR2, WC), lambda r: (r, 0)),
            out_shape=jax.ShapeDtypeStruct((rows, WC), out_dtype),
            compiler_params=pltpu.CompilerParams(dimension_semantics=("parallel",)),
            cost_estimate=pl.CostEstimate(flops=flops2, transcendentals=0,
                                          bytes_accessed=bytes2),
            input_output_aliases={0: 0},          # normalize in place over the pass-1 y
        )(y, scale_row, shift_row)
    else:
        # No batch statistics needed: fuse bias (+ ReLU) into pass 1, skip pass 2 entirely.
        bias_row = jnp.tile(bias.astype(jnp.float32), W_out).reshape(1, WC)
        bytes1 = mm_bytes * (rows * CD + CD * WC) + 4 * (rows * WC + WC)
        y_final = pl.pallas_call(
            partial(conv_bias_act_kernel, with_relu=relu),
            grid=(G1,),
            in_specs=[
                pl.BlockSpec((TR1, CD), lambda r: (r, 0)),
                pl.BlockSpec((CD, WC), lambda r: (0, 0)),
                pl.BlockSpec((1, WC), lambda r: (0, 0)),
            ],
            out_specs=pl.BlockSpec((TR1, WC), lambda r: (r, 0)),
            out_shape=jax.ShapeDtypeStruct((rows, WC), out_dtype),
            compiler_params=pltpu.CompilerParams(dimension_semantics=("parallel",)),
            cost_estimate=pl.CostEstimate(flops=flops1, transcendentals=0,
                                          bytes_accessed=bytes1),
        )(X, B, bias_row)

    out = y_final.reshape(N, H_out, W_out, Cout)
    return jnp.transpose(out, (0, 3, 1, 2))                       # NHWC(-flat) -> NCHW


def reference_forward(x, weight, bias, gamma, beta, *, stride, pad, eps,
                      conv_dtype=jnp.float32):
    y = jax.lax.conv_general_dilated(
        x.astype(conv_dtype), weight.astype(conv_dtype),
        window_strides=(stride, stride), padding=((pad, pad), (pad, pad)),
        dimension_numbers=('NCHW', 'OIHW', 'NCHW'),
        preferred_element_type=jnp.float32)
    y = y + bias.reshape(1, -1, 1, 1)
    mean = jnp.mean(y, axis=(0, 2, 3), keepdims=True)
    var = jnp.mean((y - mean) ** 2, axis=(0, 2, 3), keepdims=True)
    y = (y - mean) * jax.lax.rsqrt(var + eps) * gamma.reshape(1, -1, 1, 1) \
        + beta.reshape(1, -1, 1, 1)
    return jnp.maximum(y, 0.0)


if __name__ == "__main__":
    # Module config: Conv2d(in_channels=4, out_channels=8, kernel_size=3,
    #                       stride=1, relu=True, same_padding=True, bn=True)
    N, Cin, H, W = 2, 4, 16, 16
    Cout, K, stride = 8, 3, 1
    pad = (K - 1) // 2
    eps = 1e-5

    key = jax.random.PRNGKey(0)
    kx, kw, kb, kg, kbe = jax.random.split(key, 5)
    x = jax.random.normal(kx, (N, Cin, H, W), jnp.float32)
    weight = jax.random.normal(kw, (Cout, Cin, K, K), jnp.float32) * 0.1
    bias = jax.random.normal(kb, (Cout,), jnp.float32) * 0.1
    gamma = 1.0 + 0.1 * jax.random.normal(kg, (Cout,), jnp.float32)
    beta = 0.1 * jax.random.normal(kbe, (Cout,), jnp.float32)

    out = conv2d_forward(x, weight, bias, gamma, beta,
                         stride=stride, same_padding=True, bn=True, relu=True, eps=eps)
    out = jax.block_until_ready(out)
    assert out.shape == (N, Cout, H, W)

    # The kernel feeds the MXU bf16 inputs (f32 accumulation), so parity is checked against
    # a reference whose conv also uses bf16 inputs (identical products, f32 accumulation).
    ref = reference_forward(x, weight, bias, gamma, beta, stride=stride, pad=pad, eps=eps,
                            conv_dtype=jnp.bfloat16)
    assert jnp.allclose(out, ref, atol=2e-3, rtol=2e-3), \
        f"max abs err {jnp.max(jnp.abs(out - ref))}"

    print("KERNEL_OK")
</pallas_src>

<mosaic_0001>
module attributes {stable_mosaic.version = 11 : i64} {
  func.func @conv_stats_kernel(%arg0: i32, %arg1: memref<16x216xbf16, #tpu.memory_space<vmem>>, %arg2: memref<216x128xbf16, #tpu.memory_space<vmem>>, %arg3: memref<16x128xf32, #tpu.memory_space<vmem>>, %arg4: memref<1x1x128xf32, #tpu.memory_space<vmem>>, %arg5: memref<1x1x128xf32, #tpu.memory_space<vmem>>) attributes {dimension_semantics = [#tpu.dimension_semantics<parallel>], iteration_bounds = array<i64: 2>, scalar_prefetch = 0 : i64, scratch_operands = 0 : i64, tpu.core_type = #tpu.core_type<tc>, window_params = [{transform_indices = @transform_0, window_bounds = array<i64: 16, 216>}, {pipeline_mode = #tpu.pipeline_mode<synchronous>, transform_indices = @transform_1, window_bounds = array<i64: 216, 128>}, {transform_indices = @transform_2, window_bounds = array<i64: 16, 128>}, {transform_indices = @transform_3, window_bounds = array<i64: 1, 1, 128>}, {transform_indices = @transform_4, window_bounds = array<i64: 1, 1, 128>}]} {
    %c0 = arith.constant 0 : index
    %c0_0 = arith.constant 0 : index
    %0 = vector.load %arg1[%c0, %c0_0] : memref<16x216xbf16, #tpu.memory_space<vmem>>, vector<16x216xbf16>
    %c0_1 = arith.constant 0 : index
    %c0_2 = arith.constant 0 : index
    %1 = vector.load %arg2[%c0_1, %c0_2] : memref<216x128xbf16, #tpu.memory_space<vmem>>, vector<216x128xbf16>
    %cst = arith.constant dense<0.000000e+00> : vector<16x128xf32>
    %2 = tpu.matmul %0, %1, %cst {dimension_numbers = #tpu.dot_dimension_numbers<[1], [0], [0], [1], [0, 0, 1, 1], [], []>} : vector<16x216xbf16>, vector<216x128xbf16>, vector<16x128xf32> -> vector<16x128xf32>
    %c0_3 = arith.constant 0 : index
    %c0_4 = arith.constant 0 : index
    %3 = vector.load %arg3[%c0_3, %c0_4] : memref<16x128xf32, #tpu.memory_space<vmem>>, vector<16x128xf32>
    tpu.vector_store %arg3[%c0_3, %c0_4], %2 {strides = array<i32>} : memref<16x128xf32, #tpu.memory_space<vmem>>, vector<16x128xf32>,
    %cst_5 = arith.constant dense<0.000000e+00> : vector<128xf32>
    %4 = vector.multi_reduction <add>, %2, %cst_5 [0] : vector<16x128xf32> to vector<128xf32>
    %5 = vector.shape_cast %4 : vector<128xf32> to vector<1x128xf32>
    %6 = vector.shape_cast %5 : vector<1x128xf32> to vector<1x1x128xf32>
    %c0_6 = arith.constant 0 : index
    %c0_7 = arith.constant 0 : index
    %c0_8 = arith.constant 0 : index
    %7 = vector.load %arg4[%c0_6, %c0_7, %c0_8] : memref<1x1x128xf32, #tpu.memory_space<vmem>>, vector<1x1x128xf32>
    tpu.vector_store %arg4[%c0_6, %c0_7, %c0_8], %6 {strides = array<i32>} : memref<1x1x128xf32, #tpu.memory_space<vmem>>, vector<1x1x128xf32>,
    %8 = arith.mulf %2, %2 : vector<16x128xf32>
    %cst_9 = arith.constant dense<0.000000e+00> : vector<128xf32>
    %9 = vector.multi_reduction <add>, %8, %cst_9 [0] : vector<16x128xf32> to vector<128xf32>
    %10 = vector.shape_cast %9 : vector<128xf32> to vector<1x128xf32>
    %11 = vector.shape_cast %10 : vector<1x128xf32> to vector<1x1x128xf32>
    %c0_10 = arith.constant 0 : index
    %c0_11 = arith.constant 0 : index
    %c0_12 = arith.constant 0 : index
    %12 = vector.load %arg5[%c0_10, %c0_11, %c0_12] : memref<1x1x128xf32, #tpu.memory_space<vmem>>, vector<1x1x128xf32>
    tpu.vector_store %arg5[%c0_10, %c0_11, %c0_12], %11 {strides = array<i32>} : memref<1x1x128xf32, #tpu.memory_space<vmem>>, vector<1x1x128xf32>,
    return
  }
  func.func @transform_0(%arg0: i32) -> (i32, i32) {
    %c0_i32 = arith.constant 0 : i32
    %c0_i32_0 = arith.constant 0 : i32
    return %arg0, %c0_i32 : i32, i32
  }
  func.func @transform_1(%arg0: i32) -> (i32, i32) {
    %c0_i32 = arith.constant 0 : i32
    %c0_i32_0 = arith.constant 0 : i32
    %c0_i32_1 = arith.constant 0 : i32
    return %c0_i32, %c0_i32_0 : i32, i32
  }
  func.func @transform_2(%arg0: i32) -> (i32, i32) {
    %c0_i32 = arith.constant 0 : i32
    %c0_i32_0 = arith.constant 0 : i32
    return %arg0, %c0_i32 : i32, i32
  }
  func.func @transform_3(%arg0: i32) -> (i32, i32, i32) {
    %c0_i32 = arith.constant 0 : i32
    %c0_i32_0 = arith.constant 0 : i32
    %c0_i32_1 = arith.constant 0 : i32
    return %arg0, %c0_i32, %c0_i32_0 : i32, i32, i32
  }
  func.func @transform_4(%arg0: i32) -> (i32, i32, i32) {
    %c0_i32 = arith.constant 0 : i32
    %c0_i32_0 = arith.constant 0 : i32
    %c0_i32_1 = arith.constant 0 : i32
    return %arg0, %c0_i32, %c0_i32_0 : i32, i32, i32
  }
}

module attributes {stable_mosaic.version = 11 : i64} {
  func.func @bn_act_kernel(%arg0: i32, %arg1: memref<16x128xf32, #tpu.memory_space<vmem>>, %arg2: memref<1x128xf32, #tpu.memory_space<vmem>>, %arg3: memref<1x128xf32, #tpu.memory_space<vmem>>, %arg4: memref<16x128xf32, #tpu.memory_space<vmem>>) attributes {dimension_semantics = [#tpu.dimension_semantics<parallel>], iteration_bounds = array<i64: 2>, scalar_prefetch = 0 : i64, scratch_operands = 0 : i64, tpu.core_type = #tpu.core_type<tc>, window_params = [{transform_indices = @transform_0, window_bounds = array<i64: 16, 128>}, {pipeline_mode = #tpu.pipeline_mode<synchronous>, transform_indices = @transform_1, window_bounds = array<i64: 1, 128>}, {pipeline_mode = #tpu.pipeline_mode<synchronous>, transform_indices = @transform_2, window_bounds = array<i64: 1, 128>}, {transform_indices = @transform_3, window_bounds = array<i64: 16, 128>}]} {
    %c0 = arith.constant 0 : index
    %c0_0 = arith.constant 0 : index
    %0 = vector.load %arg1[%c0, %c0_0] : memref<16x128xf32, #tpu.memory_space<vmem>>, vector<16x128xf32>
    %c0_1 = arith.constant 0 : index
    %c0_2 = arith.constant 0 : index
    %1 = vector.load %arg2[%c0_1, %c0_2] : memref<1x128xf32, #tpu.memory_space<vmem>>, vector<1x128xf32>
    %2 = vector.broadcast %1 : vector<1x128xf32> to vector<16x128xf32>
    %3 = arith.mulf %0, %2 : vector<16x128xf32>
    %c0_3 = arith.constant 0 : index
    %c0_4 = arith.constant 0 : index
    %4 = vector.load %arg3[%c0_3, %c0_4] : memref<1x128xf32, #tpu.memory_space<vmem>>, vector<1x128xf32>
    %5 = vector.broadcast %4 : vector<1x128xf32> to vector<16x128xf32>
    %6 = arith.addf %3, %5 : vector<16x128xf32>
    %cst = arith.constant 0.000000e+00 : f32
    %7 = vector.broadcast %cst : f32 to vector<16x128xf32>
    %8 = arith.maximumf %6, %7 : vector<16x128xf32>
    %c0_5 = arith.constant 0 : index
    %c0_6 = arith.constant 0 : index
    %9 = vector.load %arg4[%c0_5, %c0_6] : memref<16x128xf32, #tpu.memory_space<vmem>>, vector<16x128xf32>
    tpu.vector_store %arg4[%c0_5, %c0_6], %8 {strides = array<i32>} : memref<16x128xf32, #tpu.memory_space<vmem>>, vector<16x128xf32>,
    return
  }
  func.func @transform_0(%arg0: i32) -> (i32, i32) {
    %c0_i32 = arith.constant 0 : i32
    %c0_i32_0 = arith.constant 0 : i32
    return %arg0, %c0_i32 : i32, i32
  }
  func.func @transform_1(%arg0: i32) -> (i32, i32) {
    %c0_i32 = arith.constant 0 : i32
    %c0_i32_0 = arith.constant 0 : i32
    %c0_i32_1 = arith.constant 0 : i32
    return %c0_i32, %c0_i32_0 : i32, i32
  }
  func.func @transform_2(%arg0: i32) -> (i32, i32) {
    %c0_i32 = arith.constant 0 : i32
    %c0_i32_0 = arith.constant 0 : i32
    %c0_i32_1 = arith.constant 0 : i32
    return %c0_i32, %c0_i32_0 : i32, i32
  }
  func.func @transform_3(%arg0: i32) -> (i32, i32) {
    %c0_i32 = arith.constant 0 : i32
    %c0_i32_0 = arith.constant 0 : i32
    return %arg0, %c0_i32 : i32, i32
  }
}

</mosaic_0001>

<llo_original>
// kernel: tile.13
$region0: #{tile.13}
  #allocation0 [shape = 's32[1]{0}', space=sflag, size = 0x4, scoped, tag = 'scoped memory for tile.13']
  %s0 = inlined_call_operand.vmem [shape: f32[8], index: 0, kind: input, shape index: {}]
  %s1 = inlined_call_operand.vmem [shape: f32[16,8], index: 1, kind: output, shape index: {}]
  // Predicated region
  $region2: #{tile.13} parent=0 // pred_check
    _
  $region3: #{tile.13} parent=0 // pred_check_branch
    %3 = sbr.rel (0) target = $region5
  $region4: #{tile.13} parent=0 // pred_region
    _
  $region5: #{tile.13} parent=0 // pred_fallthru
    _
  %v4 = vld [vmem:[%s0] ss:$0 sm:$0xff]
  %5 = vst [vmem:[%s1] sm:$0xff] %v4
  %s6 = scalar_lea.vmem %s1, 8
  %7 = vst [vmem:[%s6] sm:$0xff] %v4

// kernel: tile.14
$region0: #{tile.14}
  %s0 = inlined_call_operand.vmem [shape: f32[16,8], index: 0, kind: input, shape index: {}]
  %s1 = inlined_call_operand.vmem [shape: f32[1,128], index: 1, kind: output, shape index: {}]
  $region1: #{tile.14} parent=0
    #allocation0 [shape = 'u8[4096]{0}', space=vmem, size = 0x1000, scoped, tag = 'scoped mem for output reshape']
    %v2 = vld [vmem:[%s0] sm:$0x1]
    %vm3 = vcmask 64512
    %4 = vst.msk [vmem:[#allocation0] sm:$0x1] %vm3, %v2
    %s5 = scalar_lea.vmem %s0, 15
    %v6 = vld [vmem:[%s5] sm:$0x1]
    %7 = vrot.lane.b32.xlu0 %v6, 120
    %v8 = vpop.permute.xlu0 %7
    %vm9 = vcmask 1048512
    %10 = vst.msk [vmem:[#allocation0] sm:$0x1] %vm9, %v8
    %s11 = scalar_lea.vmem %s0, 14
    %v12 = vld [vmem:[%s11] sm:$0x1]
    %13 = vrot.lane.b32.xlu0 %v12, 112
    %v14 = vpop.permute.xlu0 %13
    %vm15 = vcmask 982912
    %16 = vst.msk [vmem:[#allocation0] sm:$0x1] %vm15, %v14
    %s17 = scalar_lea.vmem %s0, 13
    %v18 = vld [vmem:[%s17] sm:$0x1]
    %19 = vrot.lane.b32.xlu0 %v18, 104
    %v20 = vpop.permute.xlu0 %19
    %vm21 = vcmask 917312
    %22 = vst.msk [vmem:[#allocation0] sm:$0x1] %vm21, %v20
    %s23 = scalar_lea.vmem %s0, 12
    %v24 = vld [vmem:[%s23] sm:$0x1]
    %25 = vrot.lane.b32.xlu0 %v24, 96
    %v26 = vpop.permute.xlu0 %25
    %vm27 = vcmask 851712
    %28 = vst.msk [vmem:[#allocation0] sm:$0x1] %vm27, %v26
    %s29 = scalar_lea.vmem %s0, 11
    %v30 = vld [vmem:[%s29] sm:$0x1]
    %31 = vrot.lane.b32.xlu0 %v30, 88
    %v32 = vpop.permute.xlu0 %31
    %vm33 = vcmask 786112
    %34 = vst.msk [vmem:[#allocation0] sm:$0x1] %vm33, %v32
    %s35 = scalar_lea.vmem %s0, 10
    %v36 = vld [vmem:[%s35] sm:$0x1]
    %37 = vrot.lane.b32.xlu0 %v36, 80
    %v38 = vpop.permute.xlu0 %37
    %vm39 = vcmask 720512
    %40 = vst.msk [vmem:[#allocation0] sm:$0x1] %vm39, %v38
    %s41 = scalar_lea.vmem %s0, 9
    %v42 = vld [vmem:[%s41] sm:$0x1]
    %43 = vrot.lane.b32.xlu0 %v42, 72
    %v44 = vpop.permute.xlu0 %43
    %vm45 = vcmask 654912
    %46 = vst.msk [vmem:[#allocation0] sm:$0x1] %vm45, %v44
    %s47 = scalar_lea.vmem %s0, 8
    %v48 = vld [vmem:[%s47] sm:$0x1]
    %49 = vrot.lane.b32.xlu0 %v48, 64
    %v50 = vpop.permute.xlu0 %49
    %vm51 = vcmask 589312
    %52 = vst.msk [vmem:[#allocation0] sm:$0x1] %vm51, %v50
    %s53 = scalar_lea.vmem %s0, 7
    %v54 = vld [vmem:[%s53] sm:$0x1]
    %55 = vrot.lane.b32.xlu0 %v54, 56
    %v56 = vpop.permute.xlu0 %55
    %vm57 = vcmask 523712
    %58 = vst.msk [vmem:[#allocation0] sm:$0x1] %vm57, %v56
    %s59 = scalar_lea.vmem %s0, 6
    %v60 = vld [vmem:[%s59] sm:$0x1]
    %61 = vrot.lane.b32.xlu0 %v60, 48
    %v62 = vpop.permute.xlu0 %61
    %vm63 = vcmask 458112
    %64 = vst.msk [vmem:[#allocation0] sm:$0x1] %vm63, %v62
    %s65 = scalar_lea.vmem %s0, 5
    %v66 = vld [vmem:[%s65] sm:$0x1]
    %67 = vrot.lane.b32.xlu0 %v66, 40
    %v68 = vpop.permute.xlu0 %67
    %vm69 = vcmask 392512
    %70 = vst.msk [vmem:[#allocation0] sm:$0x1] %vm69, %v68
    %s71 = scalar_lea.vmem %s0, 4
    %v72 = vld [vmem:[%s71] sm:$0x1]
    %73 = vrot.lane.b32.xlu0 %v72, 32
    %v74 = vpop.permute.xlu0 %73
    %vm75 = vcmask 326912
    %76 = vst.msk [vmem:[#allocation0] sm:$0x1] %vm75, %v74
    %s77 = scalar_lea.vmem %s0, 3
    %v78 = vld [vmem:[%s77] sm:$0x1]
    %79 = vrot.lane.b32.xlu0 %v78, 24
    %v80 = vpop.permute.xlu0 %79
    %vm81 = vcmask 261312
    %82 = vst.msk [vmem:[#allocation0] sm:$0x1] %vm81, %v80
    %s83 = scalar_lea.vmem %s0, 2
    %v84 = vld [vmem:[%s83] sm:$0x1]
    %85 = vrot.lane.b32.xlu0 %v84, 16
    %v86 = vpop.permute.xlu0 %85
    %vm87 = vcmask 195712
    %88 = vst.msk [vmem:[#allocation0] sm:$0x1] %vm87, %v86
    %s89 = scalar_lea.vmem %s0, 1
    %v90 = vld [vmem:[%s89] sm:$0x1]
    %91 = vrot.lane.b32.xlu0 %v90, 8
    %v92 = vpop.permute.xlu0 %91
    %vm93 = vcmask 130112
    %94 = vst.msk [vmem:[#allocation0] sm:$0x1] %vm93, %v92
    %s96 = sshllo.u32 0, 1
    %v98 = vld [vmem:[#allocation0] sm:%s96]
    %s99 = sshllo.u32 0, 1
    %100 = vst [vmem:[%s1] sm:%s99] %v98

// kernel: conv2d_forward.2
$region0: #{conv2d_forward.2}
  #allocation0 [shape = 'u32[]', space=smem, size = 0x4, offset = 0x4, fixed_abs, tag = 'smem constant byte address 0x4 - core index']
  #allocation1 [shape = 'u32[144,128]{1,0:T(1,128)}', space=vmem, size = 0x12000, scoped, tag = 'internal scratch']
  %s0 = inlined_call_operand.vmem [shape: bf16[32,216], index: 0, kind: input, shape index: {}]
  %s1 = inlined_call_operand.vmem [shape: bf16[216,128], index: 1, kind: input, shape index: {}]
  %s2 = inlined_call_operand.vmem [shape: f32[32,128], index: 2, kind: output, shape index: {0}]
  %s3 = inlined_call_operand.vmem [shape: f32[2,1,128], index: 3, kind: output, shape index: {1}]
  %s4 = inlined_call_operand.vmem [shape: f32[2,1,128], index: 4, kind: output, shape index: {2}]
  %5 = xla_tuple %s2, %s3, %s4
  %s6 = sld [smem:[#allocation0]]
  $region57: #{conv2d_forward.2} parent=0
    _
  %s8 = ssub.s32 1, %s6
  %s9 = scalar_select 0, %s8, %s6
  loop: start=0, step=1, limit=4
  $region2: #{conv2d_forward.2} parent=0 // loop_pre_header
    _
  $region3: #{conv2d_forward.2} parent=0 // loop_header
    %s11 = sphi 0, %s15
    %p12 = scmp.ge.s32.totalorder %s11, 4
    %s21 = sphi 0, %s23
    %s24 = sphi 0, %s21
    %s25 = sphi 0, %s24
    %s41 = sphi 0, %s25
    %s45 = sphi 0, %s45
    %s47 = sphi 0, %s45
    %s48 = sphi 0, %s47
    %s62 = sphi 0, %s48
    %s68 = sphi 0, %s70
    %s71 = sphi 0, %s68
    %s72 = sphi 0, %s71
    %s88 = sphi 0, %s72
    %s94 = sphi 0, %s96
    %s97 = sphi 0, %s94
    %s98 = sphi 0, %s97
    %s114 = sphi 0, %s98
    %s120 = sphi 0, %s122
    %s123 = sphi 0, %s120
    %s124 = sphi 0, %s123
    %s140 = sphi 0, %s124
  $region4: #{conv2d_forward.2} parent=0 // loop_header_branch
    %14 = sbr.rel (%p12) target = $region8
  $region5: #{conv2d_forward.2} parent=0 // loop_body
    %s16 = ssub.s32 %s11, 1
    %s17 = ssub.s32 %s11, 2
    %s18 = sadd.s32 %s11, 1
    %s19 = ssub.s32 %s11, %s18
    %p20 = scmp.eq.s32.totalorder %s19, 0
    %s22 = sadd.s32 %s21, 1
    %s23 = scalar_select %p20, %s21, %s22
    %p26 = pneg %p20
    %p27 = scmp.eq.s32.totalorder %s11, 1
    %p28 = por %p26, %p27
    %p29 = scmp.ne.s32.totalorder %s21, %s24
    %p30 = scmp.eq.s32.totalorder %s11, 0
    %p31 = por %p29, %p30
    %p32 = scmp.ne.s32.totalorder %s21, %s24
    %p33 = scmp.eq.s32.totalorder %s16, 1
    %p34 = por %p32, %p33
    %p35 = scmp.ne.s32.totalorder %s24, %s25
    %p36 = scmp.eq.s32.totalorder %s16, 0
    %p37 = por %p35, %p36
    %p38 = scmp.ne.s32.totalorder %s24, %s25
    %p39 = scmp.eq.s32.totalorder %s17, 1
    %p40 = por %p38, %p39
    %p42 = scmp.ne.s32.totalorder %s25, %s41
    %p43 = scmp.eq.s32.totalorder %s17, 0
    %p44 = por %p42, %p43
    %s46 = sadd.s32 %s45, 1
    %p49 = scmp.eq.s32.totalorder %s11, 1
    %p50 = scmp.ne.s32.totalorder %s45, %s47
    %p51 = scmp.eq.s32.totalorder %s11, 0
    %p52 = por %p50, %p51
    %p53 = scmp.ne.s32.totalorder %s45, %s47
    %p54 = scmp.eq.s32.totalorder %s16, 1
    %p55 = por %p53, %p54
    %p56 = scmp.ne.s32.totalorder %s47, %s48
    %p57 = scmp.eq.s32.totalorder %s16, 0
    %p58 = por %p56, %p57
    %p59 = scmp.ne.s32.totalorder %s47, %s48
    %p60 = scmp.eq.s32.totalorder %s17, 1
    %p61 = por %p59, %p60
    %p63 = scmp.ne.s32.totalorder %s48, %s62
    %p64 = scmp.eq.s32.totalorder %s17, 0
    %p65 = por %p63, %p64
    %s66 = ssub.s32 %s11, %s18
    %p67 = scmp.eq.s32.totalorder %s66, 0
    %s69 = sadd.s32 %s68, 1
    %s70 = scalar_select %p67, %s68, %s69
    %p73 = pneg %p67
    %p74 = scmp.eq.s32.totalorder %s11, 1
    %p75 = por %p73, %p74
    %p76 = scmp.ne.s32.totalorder %s68, %s71
    %p77 = scmp.eq.s32.totalorder %s11, 0
    %p78 = por %p76, %p77
    %p79 = scmp.ne.s32.totalorder %s68, %s71
    %p80 = scmp.eq.s32.totalorder %s16, 1
    %p81 = por %p79, %p80
    %p82 = scmp.ne.s32.totalorder %s71, %s72
    %p83 = scmp.eq.s32.totalorder %s16, 0
    %p84 = por %p82, %p83
    %p85 = scmp.ne.s32.totalorder %s71, %s72
    %p86 = scmp.eq.s32.totalorder %s17, 1
    %p87 = por %p85, %p86
    %p89 = scmp.ne.s32.totalorder %s72, %s88
    %p90 = scmp.eq.s32.totalorder %s17, 0
    %p91 = por %p89, %p90
    %s92 = ssub.s32 %s11, %s18
    %p93 = scmp.eq.s32.totalorder %s92, 0
    %s95 = sadd.s32 %s94, 1
    %s96 = scalar_select %p93, %s94, %s95
    %p99 = pneg %p93
    %p100 = scmp.eq.s32.totalorder %s11, 1
    %p101 = por %p99, %p100
    %p102 = scmp.ne.s32.totalorder %s94, %s97
    %p103 = scmp.eq.s32.totalorder %s11, 0
    %p104 = por %p102, %p103
    %p105 = scmp.ne.s32.totalorder %s94, %s97
    %p106 = scmp.eq.s32.totalorder %s16, 1
    %p107 = por %p105, %p106
    %p108 = scmp.ne.s32.totalorder %s97, %s98
    %p109 = scmp.eq.s32.totalorder %s16, 0
    %p110 = por %p108, %p109
    %p111 = scmp.ne.s32.totalorder %s97, %s98
    %p112 = scmp.eq.s32.totalorder %s17, 1
    %p113 = por %p111, %p112
    %p115 = scmp.ne.s32.totalorder %s98, %s114
    %p116 = scmp.eq.s32.totalorder %s17, 0
    %p117 = por %p115, %p116
    %s118 = ssub.s32 %s11, %s18
    %p119 = scmp.eq.s32.totalorder %s118, 0
    %s121 = sadd.s32 %s120, 1
    %s122 = scalar_select %p119, %s120, %s121
    %p125 = pneg %p119
    %p126 = scmp.eq.s32.totalorder %s11, 1
    %p127 = por %p125, %p126
    %p128 = scmp.ne.s32.totalorder %s120, %s123
    %p129 = scmp.eq.s32.totalorder %s11, 0
    %p130 = por %p128, %p129
    %p131 = scmp.ne.s32.totalorder %s120, %s123
    %p132 = scmp.eq.s32.totalorder %s16, 1
    %p133 = por %p131, %p132
    %p134 = scmp.ne.s32.totalorder %s123, %s124
    %p135 = scmp.eq.s32.totalorder %s16, 0
    %p136 = por %p134, %p135
    %p137 = scmp.ne.s32.totalorder %s123, %s124
    %p138 = scmp.eq.s32.totalorder %s17, 1
    %p139 = por %p137, %p138
    %p141 = scmp.ne.s32.totalorder %s124, %s140
    %p142 = scmp.eq.s32.totalorder %s17, 0
    %p143 = por %p141, %p142
    %p144 = scmp.le.s32.totalorder 1, %s11
    %p145 = scmp.lt.s32.totalorder %s11, 3
    %p146 = pnand %p144, %p145
    %p147 = pneg %p146
    // Predicated region
    $region9: #{conv2d_forward.2} parent=5 // pred_check
      _
    $region10: #{conv2d_forward.2} parent=5 // pred_check_branch
      %149 = sbr.rel (%p146) target = $region12
    $region11: #{conv2d_forward.2} parent=5 // pred_region
      %s150 = ssub.s32 %s11, 1
      // Predicated region
      $region13: #{conv2d_forward.2} parent=11 // pred_check
        %p151 = pneg %p58
      $region14: #{conv2d_forward.2} parent=11 // pred_check_branch
        %153 = sbr.rel (%p151) target = $region16
      $region15: #{conv2d_forward.2} parent=11 // pred_region
        _
      $region16: #{conv2d_forward.2} parent=11 // pred_fallthru
        _
    $region12: #{conv2d_forward.2} parent=5 // pred_fallthru
      _
    %p154 = scmp.lt.s32.totalorder %s11, 2
    // Predicated region
    $region17: #{conv2d_forward.2} parent=5 // pred_check
      %p155 = pneg %p154
    $region18: #{conv2d_forward.2} parent=5 // pred_check_branch
      %157 = sbr.rel (%p155) target = $region20
    $region19: #{conv2d_forward.2} parent=5 // pred_region
      // Predicated region
      $region21: #{conv2d_forward.2} parent=19 // pred_check
        %p158 = pneg %p31
      $region22: #{conv2d_forward.2} parent=19 // pred_check_branch
        %160 = sbr.rel (%p158) target = $region24
      $region23: #{conv2d_forward.2} parent=19 // pred_region
        %s161 = smul.u32 2, %s11
        %p162 = scmp.lt.s32.totalorder %s161, 3
        %s163 = scalar_select %p162, %s161, 3
        %s164 = smul.addr %s163, 2
        %s165 = smul.addr %s164, 4
        %s166 = scalar_lea.vmem %s0, %s165
        %s167 = smul.u32 2, %s11
      $region24: #{conv2d_forward.2} parent=19 // pred_fallthru
        _
    $region20: #{conv2d_forward.2} parent=5 // pred_fallthru
      _
    %p168 = scmp.le.s32.totalorder 1, %s11
    %p169 = scmp.lt.s32.totalorder %s11, 3
    %p170 = pnand %p168, %p169
    %p171 = pneg %p170
    // Predicated region
    $region25: #{conv2d_forward.2} parent=5 // pred_check
      _
    $region26: #{conv2d_forward.2} parent=5 // pred_check_branch
      %173 = sbr.rel (%p170) target = $region28
    $region27: #{conv2d_forward.2} parent=5 // pred_region
      %s174 = ssub.s32 %s11, 1
      %s175 = smul.u32 2, %s16
      %p176 = scmp.lt.s32.totalorder %s175, 3
      %s177 = scalar_select %p176, %s175, 3
      %s178 = smul.addr %s177, 2
      %s179 = smul.addr %s178, 4
      %s180 = scalar_lea.vmem %s0, %s179
      %p181 = pneg %p37
      %p182 = pneg %p34
      %p183 = pneg %p58
      %p184 = pneg %p55
      %p185 = pneg %p84
      %p186 = pneg %p81
      %s187 = smul.u32 2, %s16
      %p188 = scmp.lt.s32.totalorder %s187, 3
      %s189 = scalar_select %p188, %s187, 3
      %s190 = smul.addr %s189, 8
      %s191 = scalar_lea.vmem %s2, %s190
      %p192 = pneg %p110
      %p193 = pneg %p107
      %p194 = scmp.lt.s32.totalorder %s16, 1
      %s195 = scalar_select %p194, %s16, 1
      %s196 = scalar_lea.vmem %s3, %s195
      %p197 = pneg %p136
      %p198 = pneg %p133
      %p199 = scmp.lt.s32.totalorder %s16, 1
      %s200 = scalar_select %p199, %s16, 1
      %s201 = scalar_lea.vmem %s4, %s200
      %s202 = smul.u32 2, %s16
      %p203 = scmp.lt.s32.totalorder %s202, 3
      %s204 = scalar_select %p203, %s202, 3
      %s205 = smul.addr %s204, 2
      %s206 = smul.addr %s205, 4
      %s207 = scalar_lea.vmem %s0, %s206
      %s208 = smul.u32 2, %s16
      %s209 = smul.u32 2, %s16
      %p210 = scmp.lt.s32.totalorder %s209, 3
      %s211 = scalar_select %p210, %s209, 3
      %s212 = smul.addr %s211, 8
      %s213 = scalar_lea.vmem %s2, %s212
      %s214 = smul.u32 2, %s16
      %p215 = scmp.lt.s32.totalorder %s16, 1
      %s216 = scalar_select %p215, %s16, 1
      %s217 = scalar_lea.vmem %s3, %s216
      %p218 = scmp.lt.s32.totalorder %s16, 1
      %s219 = scalar_select %p218, %s16, 1
      %s220 = scalar_lea.vmem %s4, %s219
      %v222 = vld [vmem:[%s207] sm:$0xff]
      %v223 = vld [vmem:[%s207 + $0x8] sm:$0xff]
      %v224 = vld [vmem:[%s1] sm:$0xf]
      %v225 = vld [vmem:[%s1 + $0x4] sm:$0xf]
      %v226 = vld [vmem:[%s1 + $0x8] sm:$0xf]
      %v227 = vld [vmem:[%s1 + $0xc] sm:$0xf]
      %v228 = vld [vmem:[%s1 + $0x10] sm:$0xf]
      %v229 = vld [vmem:[%s1 + $0x14] sm:$0xf]
      %v230 = vld [vmem:[%s1 + $0x18] sm:$0xf]
      %v231 = vld [vmem:[%s1 + $0x1c] sm:$0xf]
      %v232 = vld [vmem:[%s1 + $0x20] sm:$0xf]
      %v233 = vld [vmem:[%s1 + $0x24] sm:$0xf]
      %v234 = vld [vmem:[%s1 + $0x28] sm:$0xf]
      %v235 = vld [vmem:[%s1 + $0x2c] sm:$0xf]
      %v236 = vld [vmem:[%s1 + $0x30] sm:$0xf]
      %v237 = vld [vmem:[%s1 + $0x34] sm:$0xf]
      %v238 = vld [vmem:[%s1 + $0x38] sm:$0xf]
      %v239 = vld [vmem:[%s1 + $0x3c] sm:$0xf]
      %v240 = vld [vmem:[%s1 + $0x40] sm:$0xf]
      %v241 = vld [vmem:[%s1 + $0x44] sm:$0xf]
      %v242 = vld [vmem:[%s1 + $0x48] sm:$0xf]
      %v243 = vld [vmem:[%s1 + $0x4c] sm:$0xf]
      %v244 = vld [vmem:[%s1 + $0x50] sm:$0xf]
      %v245 = vld [vmem:[%s1 + $0x54] sm:$0xf]
      %v246 = vld [vmem:[%s1 + $0x58] sm:$0xf]
      %v247 = vld [vmem:[%s1 + $0x5c] sm:$0xf]
      %v248 = vld [vmem:[%s1 + $0x60] sm:$0xf]
      %v249 = vld [vmem:[%s1 + $0x64] sm:$0xf]
      %v250 = vld [vmem:[%s1 + $0x68] sm:$0xf]
      %v253 = vunpack.c.l.b16 %v222
      %v254 = vunpack.c.h.b16 %v222
      %v255 = vunpack.c.l.b16 %v223
      %v256 = vunpack.c.h.b16 %v223
      %v257 = vpack.c.b16 %v255, %v253
      %v258 = vpack.c.b16 %v256, %v254
      %v287 = vunpack.c.l.b16 %v224
      %v288 = vunpack.c.l.b16 %v225
      %v289 = vunpack.c.l.b16 %v226
      %v290 = vunpack.c.l.b16 %v227
      %v291 = vunpack.c.l.b16 %v228
      %v292 = vunpack.c.l.b16 %v229
      %v293 = vunpack.c.l.b16 %v230
      %v294 = vunpack.c.l.b16 %v231
      %v295 = vunpack.c.l.b16 %v232
      %v296 = vunpack.c.l.b16 %v233
      %v297 = vunpack.c.l.b16 %v234
      %v298 = vunpack.c.l.b16 %v235
      %v299 = vunpack.c.l.b16 %v236
      %v300 = vunpack.c.l.b16 %v237
      %v301 = vunpack.c.l.b16 %v238
      %v302 = vunpack.c.l.b16 %v239
      %v303 = vunpack.c.l.b16 %v240
      %v304 = vunpack.c.l.b16 %v241
      %v305 = vunpack.c.l.b16 %v242
      %v306 = vunpack.c.l.b16 %v243
      %v307 = vunpack.c.l.b16 %v244
      %v308 = vunpack.c.l.b16 %v245
      %v309 = vunpack.c.l.b16 %v246
      %v310 = vunpack.c.l.b16 %v247
      %v311 = vunpack.c.l.b16 %v248
      %v312 = vunpack.c.l.b16 %v249
      %v313 = vunpack.c.l.b16 %v250
      %v314 = vpack.c.b16 %v288, %v287
      %v315 = vpack.c.b16 %v290, %v289
      %v316 = vpack.c.b16 %v292, %v291
      %v317 = vpack.c.b16 %v294, %v293
      %v318 = vpack.c.b16 %v296, %v295
      %v319 = vpack.c.b16 %v298, %v297
      %v320 = vpack.c.b16 %v300, %v299
      %v321 = vpack.c.b16 %v302, %v301
      %v322 = vpack.c.b16 %v304, %v303
      %v323 = vpack.c.b16 %v306, %v305
      %v324 = vpack.c.b16 %v308, %v307
      %v325 = vpack.c.b16 %v310, %v309
      %v326 = vpack.c.b16 %v312, %v311
      %v327 = vpack.c.b16 %v313, %v313
      %vm341 = vcmask 719872
      %v343 = vsel %vm341, %v258, 0
      %vm345 = vcmask 1043456
      %v347 = vsel %vm345, %v327, 0
      %349 = vmatprep.subr.bf16.mxu0 0
      %350 = vmatpush1.bf16.msra.mxu0 %v314
      %351 = vmatprep.subr.bf16.mxu0 0
      %352 = vmatpush1.bf16.msra.mxu0 %v315
      %353 = vmatprep.subr.bf16.mxu0 0
      %354 = vmatpush1.bf16.msra.mxu0 %v316
      %355 = vmatprep.subr.bf16.mxu0 0
      %356 = vmatpush1.bf16.msra.mxu0 %v317
      %357 = vmatprep.subr.bf16.mxu0 0
      %358 = vmatpush1.bf16.msra.mxu0 %v318
      %359 = vmatprep.subr.bf16.mxu0 0
      %360 = vmatpush1.bf16.msra.mxu0 %v319
      %361 = vmatprep.subr.bf16.mxu0 0
      %362 = vmatpush1.bf16.msra.mxu0 %v320
      %363 = vmatprep.subr.bf16.mxu0 0
      %364 = vmatpush1.bf16.msra.mxu0 %v321
      %365 = vmatprep.subr.bf16.mxu0 0
      %366 = vmatpush1.bf16.msra.mxu0 %v322
      %367 = vmatprep.subr.bf16.mxu0 0
      %368 = vmatpush1.bf16.msra.mxu0 %v323
      %369 = vmatprep.subr.bf16.mxu0 0
      %370 = vmatpush1.bf16.msra.mxu0 %v324
      %371 = vmatprep.subr.bf16.mxu0 0
      %372 = vmatpush1.bf16.msra.mxu0 %v325
      %373 = vmatprep.subr.bf16.mxu0 0
      %374 = vmatpush1.bf16.msra.mxu0 %v326
      %375 = vmatprep.subr.bf16.mxu0 0
      %376 = vmatpush1.bf16.msra.mxu0 %v347
      %377 = vmatprep.subr.bf16.mxu0 0
      %378 = vmatpush1.bf16.msra.mxu0 0
      %379 = vmatprep.subr.bf16.mxu0 0
      %380 = vmatpush1.bf16.msra.mxu0 0
      %381 = vmatprep.mubr.bf16.mxu0 %v343
      %382 = vmatmul.mubr.bf16.gmra.mrb[0].mxu0 %v257
      %v383 = vpop.f32.mrb[0].mxu0
      %v384 = vadd.f32 0.0, %v383
      %v385 = vpop.f32.mrb[0].mxu0
      %v386 = vpop.f32.mrb[0].mxu0
      %v387 = vadd.f32 0.0, %v386
      %v388 = vpop.f32.mrb[0].mxu0
      %389 = vdwg.mxu0
      %390 = vst [vmem:[%s213] sm:$0xff] %v384
      %391 = vst [vmem:[%s213 + $0x8] sm:$0xff] %v387
      %v392 = vadd.f32 %v384, %v387
      %v393 = vrot.slane %v392, 4
      %v394 = vadd.f32 %v392, %v393
      %v395 = vrot.slane %v394, 2
      %v396 = vadd.f32 %v394, %v395
      %v397 = vrot.slane %v396, 1
      %v398 = vadd.f32 %v396, %v397
      %399 = vst [vmem:[%s217] sm:$0x1] %v398
      %v400 = vmul.f32 %v384, %v384
      %v401 = vmul.f32 %v387, %v387
      %v402 = vadd.f32 %v400, %v401
      %v403 = vrot.slane %v402, 4
      %v404 = vadd.f32 %v402, %v403
      %v405 = vrot.slane %v404, 2
      %v406 = vadd.f32 %v404, %v405
      %v407 = vrot.slane %v406, 1
      %v408 = vadd.f32 %v406, %v407
      %409 = vst [vmem:[%s220] sm:$0x1] %v408
      %s410 = smul.u32 2, %s16
      %p411 = scmp.lt.s32.totalorder %s410, 3
      %s412 = scalar_select %p411, %s410, 3
      %s413 = smul.addr %s412, 8
      %s414 = scalar_lea.vmem %s2, %s413
      %p415 = scmp.lt.s32.totalorder %s16, 1
      %s416 = scalar_select %p415, %s16, 1
      %s417 = scalar_lea.vmem %s3, %s416
      %p418 = scmp.lt.s32.totalorder %s16, 1
      %s419 = scalar_select %p418, %s16, 1
      %s420 = scalar_lea.vmem %s4, %s419
      // Predicated region
      $region29: #{conv2d_forward.2} parent=27 // pred_check
        %p421 = pneg %p81
      $region30: #{conv2d_forward.2} parent=27 // pred_check_branch
        %423 = sbr.rel (%p421) target = $region32
      $region31: #{conv2d_forward.2} parent=27 // pred_region
        %s424 = smul.u32 2, %s16
      $region32: #{conv2d_forward.2} parent=27 // pred_fallthru
        _
      // Predicated region
      $region33: #{conv2d_forward.2} parent=27 // pred_check
        %p425 = pneg %p107
      $region34: #{conv2d_forward.2} parent=27 // pred_check_branch
        %427 = sbr.rel (%p425) target = $region36
      $region35: #{conv2d_forward.2} parent=27 // pred_region
        _
      $region36: #{conv2d_forward.2} parent=27 // pred_fallthru
        _
      // Predicated region
      $region37: #{conv2d_forward.2} parent=27 // pred_check
        %p428 = pneg %p133
      $region38: #{conv2d_forward.2} parent=27 // pred_check_branch
        %430 = sbr.rel (%p428) target = $region40
      $region39: #{conv2d_forward.2} parent=27 // pred_region
        _
      $region40: #{conv2d_forward.2} parent=27 // pred_fallthru
        _
    $region28: #{conv2d_forward.2} parent=5 // pred_fallthru
      _
    %p431 = scmp.le.s32.totalorder 2, %s11
    // Predicated region
    $region41: #{conv2d_forward.2} parent=5 // pred_check
      %p432 = pneg %p431
    $region42: #{conv2d_forward.2} parent=5 // pred_check_branch
      %434 = sbr.rel (%p432) target = $region44
    $region43: #{conv2d_forward.2} parent=5 // pred_region
      %s435 = ssub.s32 %s11, 2
      // Predicated region
      $region45: #{conv2d_forward.2} parent=43 // pred_check
        %p436 = pneg %p87
      $region46: #{conv2d_forward.2} parent=43 // pred_check_branch
        %438 = sbr.rel (%p436) target = $region48
      $region47: #{conv2d_forward.2} parent=43 // pred_region
        %s439 = smul.u32 2, %s17
        %p440 = scmp.lt.s32.totalorder %s439, 3
        %s441 = scalar_select %p440, %s439, 3
        %s442 = smul.addr %s441, 8
        %s443 = scalar_lea.vmem %s2, %s442
      $region48: #{conv2d_forward.2} parent=43 // pred_fallthru
        _
      // Predicated region
      $region49: #{conv2d_forward.2} parent=43 // pred_check
        %p444 = pneg %p113
      $region50: #{conv2d_forward.2} parent=43 // pred_check_branch
        %446 = sbr.rel (%p444) target = $region52
      $region51: #{conv2d_forward.2} parent=43 // pred_region
        %p447 = scmp.lt.s32.totalorder %s17, 1
        %s448 = scalar_select %p447, %s17, 1
        %s449 = scalar_lea.vmem %s3, %s448
      $region52: #{conv2d_forward.2} parent=43 // pred_fallthru
        _
      // Predicated region
      $region53: #{conv2d_forward.2} parent=43 // pred_check
        %p450 = pneg %p139
      $region54: #{conv2d_forward.2} parent=43 // pred_check_branch
        %452 = sbr.rel (%p450) target = $region56
      $region55: #{conv2d_forward.2} parent=43 // pred_region
        %p453 = scmp.lt.s32.totalorder %s17, 1
        %s454 = scalar_select %p453, %s17, 1
        %s455 = scalar_lea.vmem %s4, %s454
      $region56: #{conv2d_forward.2} parent=43 // pred_fallthru
        _
    $region44: #{conv2d_forward.2} parent=5 // pred_fallthru
      _
  $region6: #{conv2d_forward.2} parent=0 // loop_footer
    %s15 = sadd.s32 1, %s11
  $region7: #{conv2d_forward.2} parent=0 // loop_footer_branch
    %10 = sbr.rel target = $region3
  $region8: #{conv2d_forward.2} parent=0 // loop_exit
    _

// kernel: conv2d_forward.3
$region0: #{conv2d_forward.3}
  #allocation0 [shape = 'u32[]', space=smem, size = 0x4, offset = 0x4, fixed_abs, tag = 'smem constant byte address 0x4 - core index']
  #allocation1 [shape = 'u32[144,128]{1,0:T(1,128)}', space=vmem, size = 0x12000, scoped, tag = 'internal scratch']
  %s0 = inlined_call_operand.vmem [shape: f32[32,128], index: 0, kind: input, shape index: {}, may-alias: {0,3}]
  %s1 = inlined_call_operand.vmem [shape: f32[1,128], index: 1, kind: input, shape index: {}]
  %s2 = inlined_call_operand.vmem [shape: f32[1,128], index: 2, kind: input, shape index: {}]
  %s3 = inlined_call_operand.vmem [shape: f32[32,128], index: 3, kind: output, shape index: {}, may-alias: {0,3}]
  %s4 = sld [smem:[#allocation0]]
  $region45: #{conv2d_forward.3} parent=0
    _
  %s6 = ssub.s32 1, %s4
  %s7 = scalar_select 0, %s6, %s4
  loop: start=0, step=1, limit=4
  $region2: #{conv2d_forward.3} parent=0 // loop_pre_header
    _
  $region3: #{conv2d_forward.3} parent=0 // loop_header
    %s9 = sphi 0, %s13
    %p10 = scmp.ge.s32.totalorder %s9, 4
    %s19 = sphi 0, %s21
    %s22 = sphi 0, %s19
    %s23 = sphi 0, %s22
    %s39 = sphi 0, %s23
    %s43 = sphi 0, %s43
    %s45 = sphi 0, %s43
    %s46 = sphi 0, %s45
    %s60 = sphi 0, %s46
    %s64 = sphi 0, %s64
    %s66 = sphi 0, %s64
    %s67 = sphi 0, %s66
    %s81 = sphi 0, %s67
    %s87 = sphi 0, %s89
    %s90 = sphi 0, %s87
    %s91 = sphi 0, %s90
    %s107 = sphi 0, %s91
  $region4: #{conv2d_forward.3} parent=0 // loop_header_branch
    %12 = sbr.rel (%p10) target = $region8
  $region5: #{conv2d_forward.3} parent=0 // loop_body
    %s14 = ssub.s32 %s9, 1
    %s15 = ssub.s32 %s9, 2
    %s16 = sadd.s32 %s9, 1
    %s17 = ssub.s32 %s9, %s16
    %p18 = scmp.eq.s32.totalorder %s17, 0
    %s20 = sadd.s32 %s19, 1
    %s21 = scalar_select %p18, %s19, %s20
    %p24 = pneg %p18
    %p25 = scmp.eq.s32.totalorder %s9, 1
    %p26 = por %p24, %p25
    %p27 = scmp.ne.s32.totalorder %s19, %s22
    %p28 = scmp.eq.s32.totalorder %s9, 0
    %p29 = por %p27, %p28
    %p30 = scmp.ne.s32.totalorder %s19, %s22
    %p31 = scmp.eq.s32.totalorder %s14, 1
    %p32 = por %p30, %p31
    %p33 = scmp.ne.s32.totalorder %s22, %s23
    %p34 = scmp.eq.s32.totalorder %s14, 0
    %p35 = por %p33, %p34
    %p36 = scmp.ne.s32.totalorder %s22, %s23
    %p37 = scmp.eq.s32.totalorder %s15, 1
    %p38 = por %p36, %p37
    %p40 = scmp.ne.s32.totalorder %s23, %s39
    %p41 = scmp.eq.s32.totalorder %s15, 0
    %p42 = por %p40, %p41
    %s44 = sadd.s32 %s43, 1
    %p47 = scmp.eq.s32.totalorder %s9, 1
    %p48 = scmp.ne.s32.totalorder %s43, %s45
    %p49 = scmp.eq.s32.totalorder %s9, 0
    %p50 = por %p48, %p49
    %p51 = scmp.ne.s32.totalorder %s43, %s45
    %p52 = scmp.eq.s32.totalorder %s14, 1
    %p53 = por %p51, %p52
    %p54 = scmp.ne.s32.totalorder %s45, %s46
    %p55 = scmp.eq.s32.totalorder %s14, 0
    %p56 = por %p54, %p55
    %p57 = scmp.ne.s32.totalorder %s45, %s46
    %p58 = scmp.eq.s32.totalorder %s15, 1
    %p59 = por %p57, %p58
    %p61 = scmp.ne.s32.totalorder %s46, %s60
    %p62 = scmp.eq.s32.totalorder %s15, 0
    %p63 = por %p61, %p62
    %s65 = sadd.s32 %s64, 1
    %p68 = scmp.eq.s32.totalorder %s9, 1
    %p69 = scmp.ne.s32.totalorder %s64, %s66
    %p70 = scmp.eq.s32.totalorder %s9, 0
    %p71 = por %p69, %p70
    %p72 = scmp.ne.s32.totalorder %s64, %s66
    %p73 = scmp.eq.s32.totalorder %s14, 1
    %p74 = por %p72, %p73
    %p75 = scmp.ne.s32.totalorder %s66, %s67
    %p76 = scmp.eq.s32.totalorder %s14, 0
    %p77 = por %p75, %p76
    %p78 = scmp.ne.s32.totalorder %s66, %s67
    %p79 = scmp.eq.s32.totalorder %s15, 1
    %p80 = por %p78, %p79
    %p82 = scmp.ne.s32.totalorder %s67, %s81
    %p83 = scmp.eq.s32.totalorder %s15, 0
    %p84 = por %p82, %p83
    %s85 = ssub.s32 %s9, %s16
    %p86 = scmp.eq.s32.totalorder %s85, 0
    %s88 = sadd.s32 %s87, 1
    %s89 = scalar_select %p86, %s87, %s88
    %p92 = pneg %p86
    %p93 = scmp.eq.s32.totalorder %s9, 1
    %p94 = por %p92, %p93
    %p95 = scmp.ne.s32.totalorder %s87, %s90
    %p96 = scmp.eq.s32.totalorder %s9, 0
    %p97 = por %p95, %p96
    %p98 = scmp.ne.s32.totalorder %s87, %s90
    %p99 = scmp.eq.s32.totalorder %s14, 1
    %p100 = por %p98, %p99
    %p101 = scmp.ne.s32.totalorder %s90, %s91
    %p102 = scmp.eq.s32.totalorder %s14, 0
    %p103 = por %p101, %p102
    %p104 = scmp.ne.s32.totalorder %s90, %s91
    %p105 = scmp.eq.s32.totalorder %s15, 1
    %p106 = por %p104, %p105
    %p108 = scmp.ne.s32.totalorder %s91, %s107
    %p109 = scmp.eq.s32.totalorder %s15, 0
    %p110 = por %p108, %p109
    %p111 = scmp.le.s32.totalorder 1, %s9
    %p112 = scmp.lt.s32.totalorder %s9, 3
    %p113 = pnand %p111, %p112
    %p114 = pneg %p113
    // Predicated region
    $region9: #{conv2d_forward.3} parent=5 // pred_check
      _
    $region10: #{conv2d_forward.3} parent=5 // pred_check_branch
      %116 = sbr.rel (%p113) target = $region12
    $region11: #{conv2d_forward.3} parent=5 // pred_region
      %s117 = ssub.s32 %s9, 1
      // Predicated region
      $region13: #{conv2d_forward.3} parent=11 // pred_check
        %p118 = pneg %p56
      $region14: #{conv2d_forward.3} parent=11 // pred_check_branch
        %120 = sbr.rel (%p118) target = $region16
      $region15: #{conv2d_forward.3} parent=11 // pred_region
        _
      $region16: #{conv2d_forward.3} parent=11 // pred_fallthru
        _
      // Predicated region
      $region17: #{conv2d_forward.3} parent=11 // pred_check
        %p121 = pneg %p77
      $region18: #{conv2d_forward.3} parent=11 // pred_check_branch
        %123 = sbr.rel (%p121) target = $region20
      $region19: #{conv2d_forward.3} parent=11 // pred_region
        _
      $region20: #{conv2d_forward.3} parent=11 // pred_fallthru
        _
    $region12: #{conv2d_forward.3} parent=5 // pred_fallthru
      _
    %p124 = scmp.lt.s32.totalorder %s9, 2
    // Predicated region
    $region21: #{conv2d_forward.3} parent=5 // pred_check
      %p125 = pneg %p124
    $region22: #{conv2d_forward.3} parent=5 // pred_check_branch
      %127 = sbr.rel (%p125) target = $region24
    $region23: #{conv2d_forward.3} parent=5 // pred_region
      // Predicated region
      $region25: #{conv2d_forward.3} parent=23 // pred_check
        %p128 = pneg %p29
      $region26: #{conv2d_forward.3} parent=23 // pred_check_branch
        %130 = sbr.rel (%p128) target = $region28
      $region27: #{conv2d_forward.3} parent=23 // pred_region
        %s131 = smul.u32 2, %s9
        %p132 = scmp.lt.s32.totalorder %s131, 3
        %s133 = scalar_select %p132, %s131, 3
        %s134 = smul.addr %s133, 8
        %s135 = scalar_lea.vmem %s0, %s134
        %s136 = smul.u32 2, %s9
      $region28: #{conv2d_forward.3} parent=23 // pred_fallthru
        _
    $region24: #{conv2d_forward.3} parent=5 // pred_fallthru
      _
    %p137 = scmp.le.s32.totalorder 1, %s9
    %p138 = scmp.lt.s32.totalorder %s9, 3
    %p139 = pnand %p137, %p138
    %p140 = pneg %p139
    // Predicated region
    $region29: #{conv2d_forward.3} parent=5 // pred_check
      _
    $region30: #{conv2d_forward.3} parent=5 // pred_check_branch
      %142 = sbr.rel (%p139) target = $region32
    $region31: #{conv2d_forward.3} parent=5 // pred_region
      %s143 = ssub.s32 %s9, 1
      %s144 = smul.u32 2, %s14
      %p145 = scmp.lt.s32.totalorder %s144, 3
      %s146 = scalar_select %p145, %s144, 3
      %s147 = smul.addr %s146, 8
      %s148 = scalar_lea.vmem %s0, %s147
      %p149 = pneg %p35
      %p150 = pneg %p32
      %p151 = pneg %p56
      %p152 = pneg %p53
      %p153 = pneg %p77
      %p154 = pneg %p74
      %p155 = pneg %p103
      %p156 = pneg %p100
      %s157 = smul.u32 2, %s14
      %p158 = scmp.lt.s32.totalorder %s157, 3
      %s159 = scalar_select %p158, %s157, 3
      %s160 = smul.addr %s159, 8
      %s161 = scalar_lea.vmem %s3, %s160
      %s162 = smul.u32 2, %s14
      %p163 = scmp.lt.s32.totalorder %s162, 3
      %s164 = scalar_select %p163, %s162, 3
      %s165 = smul.addr %s164, 8
      %s166 = scalar_lea.vmem %s0, %s165
      %s167 = smul.u32 2, %s14
      %s168 = smul.u32 2, %s14
      %p169 = scmp.lt.s32.totalorder %s168, 3
      %s170 = scalar_select %p169, %s168, 3
      %s171 = smul.addr %s170, 8
      %s172 = scalar_lea.vmem %s3, %s171
      %s173 = smul.u32 2, %s14
      %v174 = vld [vmem:[%s166] sm:$0xff]
      %v175 = vld [vmem:[%s166 + $0x8] sm:$0xff]
      %v176 = vld [vmem:[%s1] sm:$0x1]
      %v178 = vlaneseq
      %v179 = vshrl.u32 %v178, 7
      %v180 = vsub.s32 0, %v179
      %v181 = vrot.slane %v176, %v180
      %v183 = vmul.f32 %v174, %v181
      %v184 = vmul.f32 %v175, %v181
      %v185 = vld [vmem:[%s2] sm:$0x1]
      %v187 = vlaneseq
      %v188 = vshrl.u32 %v187, 7
      %v189 = vsub.s32 0, %v188
      %v190 = vrot.slane %v185, %v189
      %v192 = vadd.f32 %v183, %v190
      %v193 = vadd.f32 %v184, %v190
      %v194 = vmax.f32 %v192, 0.0
      %v195 = vmax.f32 %v193, 0.0
      %196 = vst [vmem:[%s172] sm:$0xff] %v194
      %197 = vst [vmem:[%s172 + $0x8] sm:$0xff] %v195
      %s198 = smul.u32 2, %s14
      %p199 = scmp.lt.s32.totalorder %s198, 3
      %s200 = scalar_select %p199, %s198, 3
      %s201 = smul.addr %s200, 8
      %s202 = scalar_lea.vmem %s3, %s201
      // Predicated region
      $region33: #{conv2d_forward.3} parent=31 // pred_check
        %p203 = pneg %p100
      $region34: #{conv2d_forward.3} parent=31 // pred_check_branch
        %205 = sbr.rel (%p203) target = $region36
      $region35: #{conv2d_forward.3} parent=31 // pred_region
        %s206 = smul.u32 2, %s14
      $region36: #{conv2d_forward.3} parent=31 // pred_fallthru
        _
    $region32: #{conv2d_forward.3} parent=5 // pred_fallthru
      _
    %p207 = scmp.le.s32.totalorder 2, %s9
    // Predicated region
    $region37: #{conv2d_forward.3} parent=5 // pred_check
      %p208 = pneg %p207
    $region38: #{conv2d_forward.3} parent=5 // pred_check_branch
      %210 = sbr.rel (%p208) target = $region40
    $region39: #{conv2d_forward.3} parent=5 // pred_region
      %s211 = ssub.s32 %s9, 2
      // Predicated region
      $region41: #{conv2d_forward.3} parent=39 // pred_check
        %p212 = pneg %p106
      $region42: #{conv2d_forward.3} parent=39 // pred_check_branch
        %214 = sbr.rel (%p212) target = $region44
      $region43: #{conv2d_forward.3} parent=39 // pred_region
        %s215 = smul.u32 2, %s15
        %p216 = scmp.lt.s32.totalorder %s215, 3
        %s217 = scalar_select %p216, %s215, 3
        %s218 = smul.addr %s217, 8
        %s219 = scalar_lea.vmem %s3, %s218
      $region44: #{conv2d_forward.3} parent=39 // pred_fallthru
        _
    $region40: #{conv2d_forward.3} parent=5 // pred_fallthru
      _
  $region6: #{conv2d_forward.3} parent=0 // loop_footer
    %s13 = sadd.s32 1, %s9
  $region7: #{conv2d_forward.3} parent=0 // loop_footer_branch
    %8 = sbr.rel target = $region3
  $region8: #{conv2d_forward.3} parent=0 // loop_exit
    _

</llo_original>
